<compile_context>
chip_gen: v6e
topology: v6e:2x2x1
jax: 0.10.0
libtpu: 0.0.40
codegen_flags: <defaults>
</compile_context>

<pallas_src>
import functools

import jax
import jax.numpy as jnp
from jax import lax
from jax.experimental import pallas as pl
from jax.experimental.pallas import tpu as pltpu


def _dice_sums_kernel(yp_ref, lab_ref, inter_ref, sumyp_ref, nval_ref,
                      *, num_classes, rows_tile, rows_total):
    """Per-(image, row-tile) partial sums for the Dice loss.

    Writes three lane-dense (8, 128) partial-sum blocks per grid step:
    intersection, sum(y_pred) and the valid-label count; the wrapper reduces
    them to scalars.
    """
    t = pl.program_id(1)

    def emit(masked):
        lab = lab_ref[0, 0]                               # (rows_tile, 128) int32
        if masked:
            # Last ragged tile only: rows past `rows_total` came from an
            # out-of-bounds block DMA (unspecified bytes).  Force those labels
            # to an out-of-range class and zero the matching y_pred rows so
            # they contribute nothing to any of the three sums.
            valid = rows_total - t * rows_tile
            row_id = lax.broadcasted_iota(jnp.int32, (rows_tile, 128), 0)
            keep = row_id < valid
            lab = jnp.where(keep, lab, num_classes)

        inter = jnp.zeros((rows_tile, 128), jnp.float32)
        total = jnp.zeros((rows_tile, 128), jnp.float32)
        # Static unroll over classes: compares against immediate constants (no
        # per-step class-id iota) and keeps every intermediate at (rows, 128)
        # so vregs stay fully packed for small C.  (Segmentation-scale C only;
        # very large C would unroll a lot of code.)
        for ci in range(num_classes):
            ypc = yp_ref[0, ci].astype(jnp.float32)       # (rows_tile, 128)
            if masked:
                ypc = jnp.where(keep, ypc, 0.0)
            total = total + ypc
            inter = inter + jnp.where(lab == ci, ypc, 0.0)
        nval = ((lab >= 0) & (lab < num_classes)).astype(jnp.float32)

        def fold(x):                                      # (rows, 128) -> (8, 128)
            # Pure vreg adds (sublane-tile aligned reshape); keeps per-step
            # store traffic to a single vreg per output.
            return jnp.sum(x.reshape(rows_tile // 8, 8, 128), axis=0)

        inter_ref[0, 0] = fold(inter)
        sumyp_ref[0, 0] = fold(total)
        nval_ref[0, 0] = fold(nval)

    if rows_total % rows_tile == 0:
        emit(False)                       # no ragged tile: mask compiled out
    else:
        last = pl.num_programs(1) - 1

        @pl.when(t != last)
        def _():
            emit(False)

        @pl.when(t == last)
        def _():
            emit(True)


def _choose_rows_tile(num_classes, rows_total, itemsize, row_align):
    """Rows (of 128 pixels) processed per grid step.

    Targets a ~2 MiB y_pred block per step (needed to approach HBM roofline
    given ~0.35 us per-step overhead) while keeping the double-buffered
    inputs inside a 12 MiB data budget -- safe under v5e's 16 MiB scoped-VMEM
    default and far below v7x's 64 MiB physical VMEM.  Prefers a tile that
    divides rows_total so the ragged-row mask is not needed at all.
    """
    target_block_bytes = 2 * 1024 * 1024
    vmem_data_budget = 12 * 1024 * 1024
    bytes_per_row = 128 * (num_classes * itemsize + 4)    # y_pred row + int32 labels
    rt = min(target_block_bytes // max(1, num_classes * 128 * itemsize),
             vmem_data_budget // (2 * bytes_per_row),     # 2x double-buffering
             rows_total)
    rt = max(row_align, rt - rt % row_align)
    rt = min(rt, rows_total)
    # Prefer a divisor of rows_total (down to half the target size): no ragged
    # last tile -> no in-kernel masking path.
    for cand in range(rt, max(row_align, rt // 2) - 1, -row_align):
        if rows_total % cand == 0:
            return cand
    return rt


@functools.partial(jax.jit, static_argnames=("eps",))
def dice_loss2(y_pred, y_true, weights=None, eps=1.0):
    """JAX/Pallas equivalent of DiceLoss2.forward."""
    n, c, h, w = y_pred.shape
    hw = h * w
    itemsize = jnp.dtype(y_pred.dtype).itemsize
    row_align = 8 * max(1, 4 // itemsize)      # 8 rows f32, 16 bf16, 32 int8
    align = row_align * 128

    # Contiguous (free) reshapes only; y_pred stays in its native dtype / NCHW
    # order.  Callers should pass int32 labels (astype is then a no-op).
    yp = y_pred.reshape(n, c, hw)
    lab = y_true.astype(jnp.int32).reshape(n, hw)

    hw_pad = ((hw + align - 1) // align) * align
    if hw_pad != hw:
        # Only for awkward H*W: pad y_pred with 0 and labels with an
        # out-of-range class so padding cannot contribute to any sum.
        yp = jnp.pad(yp, ((0, 0), (0, 0), (0, hw_pad - hw)))
        lab = jnp.pad(lab, ((0, 0), (0, hw_pad - hw)), constant_values=c)

    rows = hw_pad // 128
    yp = yp.reshape(n, c, rows, 128)           # pixels fill sublanes + lanes
    lab = lab.reshape(n, 1, rows, 128)

    rt = _choose_rows_tile(c, rows, itemsize, row_align)
    num_t = (rows + rt - 1) // rt

    kernel = functools.partial(_dice_sums_kernel, num_classes=c,
                               rows_tile=rt, rows_total=rows)
    part_shape = jax.ShapeDtypeStruct((n, num_t, 8, 128), jnp.float32)
    part_spec = pl.BlockSpec((1, 1, 8, 128), lambda i, t: (i, t, 0, 0))

    inter_p, sumyp_p, nval_p = pl.pallas_call(
        kernel,
        out_shape=(part_shape, part_shape, part_shape),
        grid_spec=pltpu.PrefetchScalarGridSpec(
            num_scalar_prefetch=0,
            grid=(n, num_t),
            in_specs=[
                pl.BlockSpec((1, c, rt, 128), lambda i, t: (i, 0, t, 0)),
                pl.BlockSpec((1, 1, rt, 128), lambda i, t: (i, 0, t, 0)),
            ],
            out_specs=(part_spec, part_spec, part_spec),
        ),
        compiler_params=pltpu.CompilerParams(
            # No cross-step state -> both axes can be split across v7x's two
            # TensorCores (works even when N == 1, as long as there are tiles).
            dimension_semantics=("parallel", "parallel"),
            vmem_limit_bytes=28 * 1024 * 1024,
        ),
    )(yp, lab)

    intersection = jnp.sum(inter_p)
    # union = sum(y_pred) + sum(one-hot); the one-hot sum is the in-kernel
    # count of labels that fall inside [0, C).
    union = jnp.sum(sumyp_p) + jnp.sum(nval_p)

    if weights is None:
        weights = jnp.float32(1.0)
    dice = weights * (1.0 - (2.0 * intersection + eps) / (union + eps))
    return jnp.sum(dice) / c


def _reference(y_pred, y_true, weights=None, eps=1.0):
    """Pure-JAX reference for correctness checking."""
    c = y_pred.shape[1]
    onehot = jax.nn.one_hot(y_true, c, axis=1, dtype=jnp.float32)   # (N,C,H,W)
    yp = y_pred.astype(jnp.float32)
    intersection = jnp.sum(yp * onehot)
    union = jnp.sum(yp + onehot)
    if weights is None:
        weights = 1.0
    dice = weights * (1.0 - (2.0 * intersection + eps) / (union + eps))
    return jnp.sum(dice) / c


if __name__ == "__main__":
    key = jax.random.PRNGKey(0)
    k1, k2 = jax.random.split(key)

    N, C, H, W = 2, 4, 16, 16
    logits = jax.random.normal(k1, (N, C, H, W), dtype=jnp.float32)
    y_pred = jax.nn.softmax(logits, axis=1)                       # (N, C, H, W)
    y_true = jax.random.randint(k2, (N, H, W), 0, C, dtype=jnp.int32)

    loss = dice_loss2(y_pred, y_true, eps=1.0)
    loss = jax.block_until_ready(loss)

    ref = jax.block_until_ready(_reference(y_pred, y_true, eps=1.0))
    assert jnp.allclose(loss, ref, rtol=1e-5, atol=1e-5), (loss, ref)

    print("KERNEL_OK")
</pallas_src>

<mosaic_0001>
module attributes {stable_mosaic.version = 11 : i64} {
  func.func @_dice_sums_kernel(%arg0: i32, %arg1: i32, %arg2: memref<1x4x8x128xf32, #tpu.memory_space<vmem>>, %arg3: memref<1x1x8x128xi32, #tpu.memory_space<vmem>>, %arg4: memref<1x1x8x128xf32, #tpu.memory_space<vmem>>, %arg5: memref<1x1x8x128xf32, #tpu.memory_space<vmem>>, %arg6: memref<1x1x8x128xf32, #tpu.memory_space<vmem>>) attributes {dimension_semantics = [#tpu.dimension_semantics<parallel>, #tpu.dimension_semantics<parallel>], iteration_bounds = array<i64: 2, 1>, scalar_prefetch = 0 : i64, scratch_operands = 0 : i64, tpu.core_type = #tpu.core_type<tc>, window_params = [{transform_indices = @transform_0, window_bounds = array<i64: 1, 4, 8, 128>}, {transform_indices = @transform_1, window_bounds = array<i64: 1, 1, 8, 128>}, {transform_indices = @transform_2, window_bounds = array<i64: 1, 1, 8, 128>}, {transform_indices = @transform_3, window_bounds = array<i64: 1, 1, 8, 128>}, {transform_indices = @transform_4, window_bounds = array<i64: 1, 1, 8, 128>}]} {
    %c0 = arith.constant 0 : index
    %c0_0 = arith.constant 0 : index
    %c0_1 = arith.constant 0 : index
    %c0_2 = arith.constant 0 : index
    %0 = vector.load %arg3[%c0, %c0_0, %c0_1, %c0_2] : memref<1x1x8x128xi32, #tpu.memory_space<vmem>>, vector<1x1x8x128xi32>
    %1 = vector.shape_cast %0 : vector<1x1x8x128xi32> to vector<8x128xi32>
    %cst = arith.constant 0.000000e+00 : f32
    %2 = vector.broadcast %cst : f32 to vector<8x128xf32>
    %cst_3 = arith.constant 0.000000e+00 : f32
    %3 = vector.broadcast %cst_3 : f32 to vector<8x128xf32>
    %c0_4 = arith.constant 0 : index
    %c0_5 = arith.constant 0 : index
    %c0_6 = arith.constant 0 : index
    %c0_7 = arith.constant 0 : index
    %4 = vector.load %arg2[%c0_4, %c0_5, %c0_6, %c0_7] : memref<1x4x8x128xf32, #tpu.memory_space<vmem>>, vector<1x1x8x128xf32>
    %5 = vector.shape_cast %4 : vector<1x1x8x128xf32> to vector<8x128xf32>
    %6 = arith.addf %3, %5 : vector<8x128xf32>
    %c0_i32 = arith.constant 0 : i32
    %7 = vector.broadcast %c0_i32 : i32 to vector<8x128xi32>
    %8 = arith.cmpi eq, %1, %7 : vector<8x128xi32>
    %cst_8 = arith.constant 0.000000e+00 : f32
    %9 = vector.broadcast %cst_8 : f32 to vector<8x128xf32>
    %10 = arith.select %8, %5, %9 : vector<8x128xi1>, vector<8x128xf32>
    %11 = arith.addf %2, %10 : vector<8x128xf32>
    %c0_9 = arith.constant 0 : index
    %c1 = arith.constant 1 : index
    %c0_10 = arith.constant 0 : index
    %c0_11 = arith.constant 0 : index
    %12 = vector.load %arg2[%c0_9, %c1, %c0_10, %c0_11] : memref<1x4x8x128xf32, #tpu.memory_space<vmem>>, vector<1x1x8x128xf32>
    %13 = vector.shape_cast %12 : vector<1x1x8x128xf32> to vector<8x128xf32>
    %14 = arith.addf %6, %13 : vector<8x128xf32>
    %c1_i32 = arith.constant 1 : i32
    %15 = vector.broadcast %c1_i32 : i32 to vector<8x128xi32>
    %16 = arith.cmpi eq, %1, %15 : vector<8x128xi32>
    %cst_12 = arith.constant 0.000000e+00 : f32
    %17 = vector.broadcast %cst_12 : f32 to vector<8x128xf32>
    %18 = arith.select %16, %13, %17 : vector<8x128xi1>, vector<8x128xf32>
    %19 = arith.addf %11, %18 : vector<8x128xf32>
    %c0_13 = arith.constant 0 : index
    %c2 = arith.constant 2 : index
    %c0_14 = arith.constant 0 : index
    %c0_15 = arith.constant 0 : index
    %20 = vector.load %arg2[%c0_13, %c2, %c0_14, %c0_15] : memref<1x4x8x128xf32, #tpu.memory_space<vmem>>, vector<1x1x8x128xf32>
    %21 = vector.shape_cast %20 : vector<1x1x8x128xf32> to vector<8x128xf32>
    %22 = arith.addf %14, %21 : vector<8x128xf32>
    %c2_i32 = arith.constant 2 : i32
    %23 = vector.broadcast %c2_i32 : i32 to vector<8x128xi32>
    %24 = arith.cmpi eq, %1, %23 : vector<8x128xi32>
    %cst_16 = arith.constant 0.000000e+00 : f32
    %25 = vector.broadcast %cst_16 : f32 to vector<8x128xf32>
    %26 = arith.select %24, %21, %25 : vector<8x128xi1>, vector<8x128xf32>
    %27 = arith.addf %19, %26 : vector<8x128xf32>
    %c0_17 = arith.constant 0 : index
    %c3 = arith.constant 3 : index
    %c0_18 = arith.constant 0 : index
    %c0_19 = arith.constant 0 : index
    %28 = vector.load %arg2[%c0_17, %c3, %c0_18, %c0_19] : memref<1x4x8x128xf32, #tpu.memory_space<vmem>>, vector<1x1x8x128xf32>
    %29 = vector.shape_cast %28 : vector<1x1x8x128xf32> to vector<8x128xf32>
    %30 = arith.addf %22, %29 : vector<8x128xf32>
    %c3_i32 = arith.constant 3 : i32
    %31 = vector.broadcast %c3_i32 : i32 to vector<8x128xi32>
    %32 = arith.cmpi eq, %1, %31 : vector<8x128xi32>
    %cst_20 = arith.constant 0.000000e+00 : f32
    %33 = vector.broadcast %cst_20 : f32 to vector<8x128xf32>
    %34 = arith.select %32, %29, %33 : vector<8x128xi1>, vector<8x128xf32>
    %35 = arith.addf %27, %34 : vector<8x128xf32>
    %c0_i32_21 = arith.constant 0 : i32
    %36 = vector.broadcast %c0_i32_21 : i32 to vector<8x128xi32>
    %37 = arith.cmpi sge, %1, %36 : vector<8x128xi32>
    %c4_i32 = arith.constant 4 : i32
    %38 = vector.broadcast %c4_i32 : i32 to vector<8x128xi32>
    %39 = arith.cmpi slt, %1, %38 : vector<8x128xi32>
    %40 = arith.andi %37, %39 : vector<8x128xi1>
    %41 = arith.extui %40 : vector<8x128xi1> to vector<8x128xi32>
    %42 = arith.sitofp %41 : vector<8x128xi32> to vector<8x128xf32>
    %43 = vector.shape_cast %35 : vector<8x128xf32> to vector<1x8x128xf32>
    %cst_22 = arith.constant dense<0.000000e+00> : vector<8x128xf32>
    %44 = vector.multi_reduction <add>, %43, %cst_22 [0] : vector<1x8x128xf32> to vector<8x128xf32>
    %c0_23 = arith.constant 0 : index
    %c0_24 = arith.constant 0 : index
    %c0_25 = arith.constant 0 : index
    %c0_26 = arith.constant 0 : index
    %45 = vector.load %arg4[%c0_23, %c0_24, %c0_25, %c0_26] : memref<1x1x8x128xf32, #tpu.memory_space<vmem>>, vector<1x1x8x128xf32>
    %46 = vector.shape_cast %45 : vector<1x1x8x128xf32> to vector<8x128xf32>
    %47 = vector.shape_cast %44 : vector<8x128xf32> to vector<1x1x8x128xf32>
    tpu.vector_store %arg4[%c0_23, %c0_24, %c0_25, %c0_26], %47 {strides = array<i32>} : memref<1x1x8x128xf32, #tpu.memory_space<vmem>>, vector<1x1x8x128xf32>,
    %48 = vector.shape_cast %30 : vector<8x128xf32> to vector<1x8x128xf32>
    %cst_27 = arith.constant dense<0.000000e+00> : vector<8x128xf32>
    %49 = vector.multi_reduction <add>, %48, %cst_27 [0] : vector<1x8x128xf32> to vector<8x128xf32>
    %c0_28 = arith.constant 0 : index
    %c0_29 = arith.constant 0 : index
    %c0_30 = arith.constant 0 : index
    %c0_31 = arith.constant 0 : index
    %50 = vector.load %arg5[%c0_28, %c0_29, %c0_30, %c0_31] : memref<1x1x8x128xf32, #tpu.memory_space<vmem>>, vector<1x1x8x128xf32>
    %51 = vector.shape_cast %50 : vector<1x1x8x128xf32> to vector<8x128xf32>
    %52 = vector.shape_cast %49 : vector<8x128xf32> to vector<1x1x8x128xf32>
    tpu.vector_store %arg5[%c0_28, %c0_29, %c0_30, %c0_31], %52 {strides = array<i32>} : memref<1x1x8x128xf32, #tpu.memory_space<vmem>>, vector<1x1x8x128xf32>,
    %53 = vector.shape_cast %42 : vector<8x128xf32> to vector<1x8x128xf32>
    %cst_32 = arith.constant dense<0.000000e+00> : vector<8x128xf32>
    %54 = vector.multi_reduction <add>, %53, %cst_32 [0] : vector<1x8x128xf32> to vector<8x128xf32>
    %c0_33 = arith.constant 0 : index
    %c0_34 = arith.constant 0 : index
    %c0_35 = arith.constant 0 : index
    %c0_36 = arith.constant 0 : index
    %55 = vector.load %arg6[%c0_33, %c0_34, %c0_35, %c0_36] : memref<1x1x8x128xf32, #tpu.memory_space<vmem>>, vector<1x1x8x128xf32>
    %56 = vector.shape_cast %55 : vector<1x1x8x128xf32> to vector<8x128xf32>
    %57 = vector.shape_cast %54 : vector<8x128xf32> to vector<1x1x8x128xf32>
    tpu.vector_store %arg6[%c0_33, %c0_34, %c0_35, %c0_36], %57 {strides = array<i32>} : memref<1x1x8x128xf32, #tpu.memory_space<vmem>>, vector<1x1x8x128xf32>,
    return
  }
  func.func @transform_0(%arg0: i32, %arg1: i32) -> (i32, i32, i32, i32) {
    %c0_i32 = arith.constant 0 : i32
    %c0_i32_0 = arith.constant 0 : i32
    %c0_i32_1 = arith.constant 0 : i32
    return %arg0, %c0_i32, %arg1, %c0_i32_0 : i32, i32, i32, i32
  }
  func.func @transform_1(%arg0: i32, %arg1: i32) -> (i32, i32, i32, i32) {
    %c0_i32 = arith.constant 0 : i32
    %c0_i32_0 = arith.constant 0 : i32
    %c0_i32_1 = arith.constant 0 : i32
    return %arg0, %c0_i32, %arg1, %c0_i32_0 : i32, i32, i32, i32
  }
  func.func @transform_2(%arg0: i32, %arg1: i32) -> (i32, i32, i32, i32) {
    %c0_i32 = arith.constant 0 : i32
    %c0_i32_0 = arith.constant 0 : i32
    %c0_i32_1 = arith.constant 0 : i32
    return %arg0, %arg1, %c0_i32, %c0_i32_0 : i32, i32, i32, i32
  }
  func.func @transform_3(%arg0: i32, %arg1: i32) -> (i32, i32, i32, i32) {
    %c0_i32 = arith.constant 0 : i32
    %c0_i32_0 = arith.constant 0 : i32
    %c0_i32_1 = arith.constant 0 : i32
    return %arg0, %arg1, %c0_i32, %c0_i32_0 : i32, i32, i32, i32
  }
  func.func @transform_4(%arg0: i32, %arg1: i32) -> (i32, i32, i32, i32) {
    %c0_i32 = arith.constant 0 : i32
    %c0_i32_0 = arith.constant 0 : i32
    %c0_i32_1 = arith.constant 0 : i32
    return %arg0, %arg1, %c0_i32, %c0_i32_0 : i32, i32, i32, i32
  }
}

</mosaic_0001>

<llo_original>
// kernel: dice_loss2.1
$region0: #{dice_loss2.1}
  #allocation0 [shape = 'u32[]', space=smem, size = 0x4, offset = 0x4, fixed_abs, tag = 'smem constant byte address 0x4 - core index']
  #allocation1 [shape = 'u32[144,128]{1,0:T(1,128)}', space=vmem, size = 0x12000, scoped, tag = 'internal scratch']
  %s0 = inlined_call_operand.vmem [shape: f32[2,4,8,128], index: 0, kind: input, shape index: {}]
  %s1 = inlined_call_operand.vmem [shape: s32[2,1,8,128], index: 1, kind: input, shape index: {}]
  %s2 = inlined_call_operand.vmem [shape: f32[2,1,8,128], index: 2, kind: output, shape index: {0}]
  %s3 = inlined_call_operand.vmem [shape: f32[2,1,8,128], index: 3, kind: output, shape index: {1}]
  %s4 = inlined_call_operand.vmem [shape: f32[2,1,8,128], index: 4, kind: output, shape index: {2}]
  %5 = xla_tuple %s2, %s3, %s4
  %s6 = sld [smem:[#allocation0]]
  $region57: #{dice_loss2.1} parent=0
    _
  %s8 = ssub.s32 1, %s6
  %s9 = scalar_select 0, %s8, %s6
  loop: start=0, step=1, limit=4
  $region2: #{dice_loss2.1} parent=0 // loop_pre_header
    _
  $region3: #{dice_loss2.1} parent=0 // loop_header
    %s11 = sphi 0, %s15
    %p12 = scmp.ge.s32.totalorder %s11, 4
    %s18 = sphi 0, %s30
    %s19 = sphi 0, %s26
    %s20 = sphi 0, %s18
    %s21 = sphi 0, %s19
    %s22 = sphi 0, %s20
    %s23 = sphi 0, %s21
    %s35 = sphi 0, %s37
    %s38 = sphi 0, %s35
    %s39 = sphi 0, %s38
    %s55 = sphi 0, %s39
    %s63 = sphi 0, %s65
    %s66 = sphi 0, %s63
    %s67 = sphi 0, %s66
    %s83 = sphi 0, %s67
    %s91 = sphi 0, %s93
    %s94 = sphi 0, %s91
    %s95 = sphi 0, %s94
    %s111 = sphi 0, %s95
    %s119 = sphi 0, %s121
    %s122 = sphi 0, %s119
    %s123 = sphi 0, %s122
    %s139 = sphi 0, %s123
    %s147 = sphi 0, %s149
    %s150 = sphi 0, %s147
    %s151 = sphi 0, %s150
    %s167 = sphi 0, %s151
  $region4: #{dice_loss2.1} parent=0 // loop_header_branch
    %14 = sbr.rel (%p12) target = $region8
  $region5: #{dice_loss2.1} parent=0 // loop_body
    %s16 = ssub.s32 %s11, 1
    %s17 = ssub.s32 %s11, 2
    %s24 = sadd.s32 1, %s19
    %p25 = scmp.ge.s32.totalorder %s24, 1
    %s26 = scalar_select %p25, 0, %s24
    %s27 = sadd.s32 1, %s18
    %s28 = scalar_select %p25, %s27, %s18
    %p29 = scmp.ge.s32.totalorder %s28, 2
    %s30 = scalar_select %p29, 0, %s28
    %s31 = ssub.s32 %s18, %s30
    %s32 = ssub.s32 %s19, %s26
    %s33 = sor.u32 %s31, %s32
    %p34 = scmp.eq.s32.totalorder %s33, 0
    %s36 = sadd.s32 %s35, 1
    %s37 = scalar_select %p34, %s35, %s36
    %p40 = pneg %p34
    %p41 = scmp.eq.s32.totalorder %s11, 1
    %p42 = por %p40, %p41
    %p43 = scmp.ne.s32.totalorder %s35, %s38
    %p44 = scmp.eq.s32.totalorder %s11, 0
    %p45 = por %p43, %p44
    %p46 = scmp.ne.s32.totalorder %s35, %s38
    %p47 = scmp.eq.s32.totalorder %s16, 1
    %p48 = por %p46, %p47
    %p49 = scmp.ne.s32.totalorder %s38, %s39
    %p50 = scmp.eq.s32.totalorder %s16, 0
    %p51 = por %p49, %p50
    %p52 = scmp.ne.s32.totalorder %s38, %s39
    %p53 = scmp.eq.s32.totalorder %s17, 1
    %p54 = por %p52, %p53
    %p56 = scmp.ne.s32.totalorder %s39, %s55
    %p57 = scmp.eq.s32.totalorder %s17, 0
    %p58 = por %p56, %p57
    %s59 = ssub.s32 %s18, %s30
    %s60 = ssub.s32 %s19, %s26
    %s61 = sor.u32 %s59, %s60
    %p62 = scmp.eq.s32.totalorder %s61, 0
    %s64 = sadd.s32 %s63, 1
    %s65 = scalar_select %p62, %s63, %s64
    %p68 = pneg %p62
    %p69 = scmp.eq.s32.totalorder %s11, 1
    %p70 = por %p68, %p69
    %p71 = scmp.ne.s32.totalorder %s63, %s66
    %p72 = scmp.eq.s32.totalorder %s11, 0
    %p73 = por %p71, %p72
    %p74 = scmp.ne.s32.totalorder %s63, %s66
    %p75 = scmp.eq.s32.totalorder %s16, 1
    %p76 = por %p74, %p75
    %p77 = scmp.ne.s32.totalorder %s66, %s67
    %p78 = scmp.eq.s32.totalorder %s16, 0
    %p79 = por %p77, %p78
    %p80 = scmp.ne.s32.totalorder %s66, %s67
    %p81 = scmp.eq.s32.totalorder %s17, 1
    %p82 = por %p80, %p81
    %p84 = scmp.ne.s32.totalorder %s67, %s83
    %p85 = scmp.eq.s32.totalorder %s17, 0
    %p86 = por %p84, %p85
    %s87 = ssub.s32 %s18, %s30
    %s88 = ssub.s32 %s19, %s26
    %s89 = sor.u32 %s87, %s88
    %p90 = scmp.eq.s32.totalorder %s89, 0
    %s92 = sadd.s32 %s91, 1
    %s93 = scalar_select %p90, %s91, %s92
    %p96 = pneg %p90
    %p97 = scmp.eq.s32.totalorder %s11, 1
    %p98 = por %p96, %p97
    %p99 = scmp.ne.s32.totalorder %s91, %s94
    %p100 = scmp.eq.s32.totalorder %s11, 0
    %p101 = por %p99, %p100
    %p102 = scmp.ne.s32.totalorder %s91, %s94
    %p103 = scmp.eq.s32.totalorder %s16, 1
    %p104 = por %p102, %p103
    %p105 = scmp.ne.s32.totalorder %s94, %s95
    %p106 = scmp.eq.s32.totalorder %s16, 0
    %p107 = por %p105, %p106
    %p108 = scmp.ne.s32.totalorder %s94, %s95
    %p109 = scmp.eq.s32.totalorder %s17, 1
    %p110 = por %p108, %p109
    %p112 = scmp.ne.s32.totalorder %s95, %s111
    %p113 = scmp.eq.s32.totalorder %s17, 0
    %p114 = por %p112, %p113
    %s115 = ssub.s32 %s18, %s30
    %s116 = ssub.s32 %s19, %s26
    %s117 = sor.u32 %s115, %s116
    %p118 = scmp.eq.s32.totalorder %s117, 0
    %s120 = sadd.s32 %s119, 1
    %s121 = scalar_select %p118, %s119, %s120
    %p124 = pneg %p118
    %p125 = scmp.eq.s32.totalorder %s11, 1
    %p126 = por %p124, %p125
    %p127 = scmp.ne.s32.totalorder %s119, %s122
    %p128 = scmp.eq.s32.totalorder %s11, 0
    %p129 = por %p127, %p128
    %p130 = scmp.ne.s32.totalorder %s119, %s122
    %p131 = scmp.eq.s32.totalorder %s16, 1
    %p132 = por %p130, %p131
    %p133 = scmp.ne.s32.totalorder %s122, %s123
    %p134 = scmp.eq.s32.totalorder %s16, 0
    %p135 = por %p133, %p134
    %p136 = scmp.ne.s32.totalorder %s122, %s123
    %p137 = scmp.eq.s32.totalorder %s17, 1
    %p138 = por %p136, %p137
    %p140 = scmp.ne.s32.totalorder %s123, %s139
    %p141 = scmp.eq.s32.totalorder %s17, 0
    %p142 = por %p140, %p141
    %s143 = ssub.s32 %s18, %s30
    %s144 = ssub.s32 %s19, %s26
    %s145 = sor.u32 %s143, %s144
    %p146 = scmp.eq.s32.totalorder %s145, 0
    %s148 = sadd.s32 %s147, 1
    %s149 = scalar_select %p146, %s147, %s148
    %p152 = pneg %p146
    %p153 = scmp.eq.s32.totalorder %s11, 1
    %p154 = por %p152, %p153
    %p155 = scmp.ne.s32.totalorder %s147, %s150
    %p156 = scmp.eq.s32.totalorder %s11, 0
    %p157 = por %p155, %p156
    %p158 = scmp.ne.s32.totalorder %s147, %s150
    %p159 = scmp.eq.s32.totalorder %s16, 1
    %p160 = por %p158, %p159
    %p161 = scmp.ne.s32.totalorder %s150, %s151
    %p162 = scmp.eq.s32.totalorder %s16, 0
    %p163 = por %p161, %p162
    %p164 = scmp.ne.s32.totalorder %s150, %s151
    %p165 = scmp.eq.s32.totalorder %s17, 1
    %p166 = por %p164, %p165
    %p168 = scmp.ne.s32.totalorder %s151, %s167
    %p169 = scmp.eq.s32.totalorder %s17, 0
    %p170 = por %p168, %p169
    %p171 = scmp.le.s32.totalorder 1, %s11
    %p172 = scmp.lt.s32.totalorder %s11, 3
    %p173 = pnand %p171, %p172
    %p174 = pneg %p173
    // Predicated region
    $region9: #{dice_loss2.1} parent=5 // pred_check
      _
    $region10: #{dice_loss2.1} parent=5 // pred_check_branch
      %176 = sbr.rel (%p173) target = $region12
    $region11: #{dice_loss2.1} parent=5 // pred_region
      %s177 = ssub.s32 %s11, 1
    $region12: #{dice_loss2.1} parent=5 // pred_fallthru
      _
    %p178 = scmp.lt.s32.totalorder %s11, 2
    // Predicated region
    $region13: #{dice_loss2.1} parent=5 // pred_check
      %p179 = pneg %p178
    $region14: #{dice_loss2.1} parent=5 // pred_check_branch
      %181 = sbr.rel (%p179) target = $region16
    $region15: #{dice_loss2.1} parent=5 // pred_region
      // Predicated region
      $region17: #{dice_loss2.1} parent=15 // pred_check
        %p182 = pneg %p45
      $region18: #{dice_loss2.1} parent=15 // pred_check_branch
        %184 = sbr.rel (%p182) target = $region20
      $region19: #{dice_loss2.1} parent=15 // pred_region
        %p185 = scmp.lt.s32.totalorder %s18, 1
        %s186 = scalar_select %p185, %s18, 1
        %p187 = scmp.lt.s32.totalorder %s19, 0
        %s188 = scalar_select %p187, %s19, 0
        %s189 = smul.addr %s186, 4
        %s190 = sadd.s32 %s188, %s189
        %s191 = smul.addr %s190, 8
        %s192 = scalar_lea.vmem %s0, %s191
      $region20: #{dice_loss2.1} parent=15 // pred_fallthru
        _
      // Predicated region
      $region21: #{dice_loss2.1} parent=15 // pred_check
        %p193 = pneg %p73
      $region22: #{dice_loss2.1} parent=15 // pred_check_branch
        %195 = sbr.rel (%p193) target = $region24
      $region23: #{dice_loss2.1} parent=15 // pred_region
        %p196 = scmp.lt.s32.totalorder %s18, 1
        %s197 = scalar_select %p196, %s18, 1
        %p198 = scmp.lt.s32.totalorder %s19, 0
        %s199 = scalar_select %p198, %s19, 0
        %s200 = sadd.s32 %s199, %s197
        %s201 = smul.addr %s200, 8
        %s202 = scalar_lea.vmem %s1, %s201
      $region24: #{dice_loss2.1} parent=15 // pred_fallthru
        _
    $region16: #{dice_loss2.1} parent=5 // pred_fallthru
      _
    %p203 = scmp.le.s32.totalorder 1, %s11
    %p204 = scmp.lt.s32.totalorder %s11, 3
    %p205 = pnand %p203, %p204
    %p206 = pneg %p205
    // Predicated region
    $region25: #{dice_loss2.1} parent=5 // pred_check
      _
    $region26: #{dice_loss2.1} parent=5 // pred_check_branch
      %208 = sbr.rel (%p205) target = $region28
    $region27: #{dice_loss2.1} parent=5 // pred_region
      %s209 = ssub.s32 %s11, 1
      %p210 = scmp.lt.s32.totalorder %s20, 1
      %s211 = scalar_select %p210, %s20, 1
      %p212 = scmp.lt.s32.totalorder %s21, 0
      %s213 = scalar_select %p212, %s21, 0
      %s214 = smul.addr %s211, 4
      %s215 = sadd.s32 %s213, %s214
      %s216 = smul.addr %s215, 8
      %s217 = scalar_lea.vmem %s0, %s216
      %p218 = pneg %p51
      %p219 = pneg %p48
      %p220 = scmp.lt.s32.totalorder %s20, 1
      %s221 = scalar_select %p220, %s20, 1
      %p222 = scmp.lt.s32.totalorder %s21, 0
      %s223 = scalar_select %p222, %s21, 0
      %s224 = sadd.s32 %s223, %s221
      %s225 = smul.addr %s224, 8
      %s226 = scalar_lea.vmem %s1, %s225
      %p227 = pneg %p79
      %p228 = pneg %p76
      %p229 = pneg %p107
      %p230 = pneg %p104
      %p231 = scmp.lt.s32.totalorder %s20, 1
      %s232 = scalar_select %p231, %s20, 1
      %p233 = scmp.lt.s32.totalorder %s21, 0
      %s234 = scalar_select %p233, %s21, 0
      %s235 = sadd.s32 %s234, %s232
      %s236 = smul.addr %s235, 8
      %s237 = scalar_lea.vmem %s2, %s236
      %p238 = pneg %p135
      %p239 = pneg %p132
      %p240 = scmp.lt.s32.totalorder %s20, 1
      %s241 = scalar_select %p240, %s20, 1
      %p242 = scmp.lt.s32.totalorder %s21, 0
      %s243 = scalar_select %p242, %s21, 0
      %s244 = sadd.s32 %s243, %s241
      %s245 = smul.addr %s244, 8
      %s246 = scalar_lea.vmem %s3, %s245
      %p247 = pneg %p163
      %p248 = pneg %p160
      %p249 = scmp.lt.s32.totalorder %s20, 1
      %s250 = scalar_select %p249, %s20, 1
      %p251 = scmp.lt.s32.totalorder %s21, 0
      %s252 = scalar_select %p251, %s21, 0
      %s253 = sadd.s32 %s252, %s250
      %s254 = smul.addr %s253, 8
      %s255 = scalar_lea.vmem %s4, %s254
      %p256 = scmp.lt.s32.totalorder %s20, 1
      %s257 = scalar_select %p256, %s20, 1
      %p258 = scmp.lt.s32.totalorder %s21, 0
      %s259 = scalar_select %p258, %s21, 0
      %s260 = smul.addr %s257, 4
      %s261 = sadd.s32 %s259, %s260
      %s262 = smul.addr %s261, 8
      %s263 = scalar_lea.vmem %s0, %s262
      %p264 = scmp.lt.s32.totalorder %s20, 1
      %s265 = scalar_select %p264, %s20, 1
      %p266 = scmp.lt.s32.totalorder %s21, 0
      %s267 = scalar_select %p266, %s21, 0
      %s268 = sadd.s32 %s267, %s265
      %s269 = smul.addr %s268, 8
      %s270 = scalar_lea.vmem %s1, %s269
      %p271 = scmp.lt.s32.totalorder %s20, 1
      %s272 = scalar_select %p271, %s20, 1
      %p273 = scmp.lt.s32.totalorder %s21, 0
      %s274 = scalar_select %p273, %s21, 0
      %s275 = sadd.s32 %s274, %s272
      %s276 = smul.addr %s275, 8
      %s277 = scalar_lea.vmem %s2, %s276
      %p278 = scmp.lt.s32.totalorder %s20, 1
      %s279 = scalar_select %p278, %s20, 1
      %p280 = scmp.lt.s32.totalorder %s21, 0
      %s281 = scalar_select %p280, %s21, 0
      %s282 = sadd.s32 %s281, %s279
      %s283 = smul.addr %s282, 8
      %s284 = scalar_lea.vmem %s3, %s283
      %p285 = scmp.lt.s32.totalorder %s20, 1
      %s286 = scalar_select %p285, %s20, 1
      %p287 = scmp.lt.s32.totalorder %s21, 0
      %s288 = scalar_select %p287, %s21, 0
      %s289 = sadd.s32 %s288, %s286
      %s290 = smul.addr %s289, 8
      %s291 = scalar_lea.vmem %s4, %s290
      %v292 = vld [vmem:[%s270] sm:$0xff]
      %v293 = vld [vmem:[%s263] sm:$0xff]
      %v294 = vadd.f32 %v293, 0.0
      %vm295 = vcmp.eq.s32.totalorder %v292, 0
      %v296 = vsel %vm295, %v293, 0.0
      %v297 = vadd.f32 %v296, 0.0
      %s298 = scalar_lea.vmem %s263, 8
      %v299 = vld [vmem:[%s298] sm:$0xff]
      %v300 = vadd.f32 %v294, %v299
      %vm301 = vcmp.eq.s32.totalorder %v292, 1
      %v302 = vsel %vm301, %v299, 0.0
      %v303 = vadd.f32 %v297, %v302
      %s304 = scalar_lea.vmem %s263, 16
      %v305 = vld [vmem:[%s304] sm:$0xff]
      %v306 = vadd.f32 %v300, %v305
      %vm307 = vcmp.eq.s32.totalorder %v292, 2
      %v308 = vsel %vm307, %v305, 0.0
      %v309 = vadd.f32 %v303, %v308
      %s310 = scalar_lea.vmem %s263, 24
      %v311 = vld [vmem:[%s310] sm:$0xff]
      %v312 = vadd.f32 %v306, %v311
      %vm313 = vcmp.eq.s32.totalorder %v292, 3
      %v314 = vsel %vm313, %v311, 0.0
      %v315 = vadd.f32 %v309, %v314
      %vm316 = vcmp.ge.s32.totalorder %v292, 0
      %vm317 = vcmp.lt.s32.totalorder %v292, 4
      %vm318 = vmand %vm316, %vm317
      %v319 = vsel %vm318, 1, 0
      %v320 = vcvt.s32.f32 %v319
      %v321 = vadd.f32 %v315, 0.0
      %322 = vst [vmem:[%s277] sm:$0xff] %v321
      %v323 = vadd.f32 %v312, 0.0
      %324 = vst [vmem:[%s284] sm:$0xff] %v323
      %v325 = vadd.f32 %v320, 0.0
      %326 = vst [vmem:[%s291] sm:$0xff] %v325
      %p327 = scmp.lt.s32.totalorder %s20, 1
      %s328 = scalar_select %p327, %s20, 1
      %p329 = scmp.lt.s32.totalorder %s21, 0
      %s330 = scalar_select %p329, %s21, 0
      %s331 = sadd.s32 %s330, %s328
      %s332 = smul.addr %s331, 8
      %s333 = scalar_lea.vmem %s2, %s332
      %p334 = scmp.lt.s32.totalorder %s20, 1
      %s335 = scalar_select %p334, %s20, 1
      %p336 = scmp.lt.s32.totalorder %s21, 0
      %s337 = scalar_select %p336, %s21, 0
      %s338 = sadd.s32 %s337, %s335
      %s339 = smul.addr %s338, 8
      %s340 = scalar_lea.vmem %s3, %s339
      %p341 = scmp.lt.s32.totalorder %s20, 1
      %s342 = scalar_select %p341, %s20, 1
      %p343 = scmp.lt.s32.totalorder %s21, 0
      %s344 = scalar_select %p343, %s21, 0
      %s345 = sadd.s32 %s344, %s342
      %s346 = smul.addr %s345, 8
      %s347 = scalar_lea.vmem %s4, %s346
      // Predicated region
      $region29: #{dice_loss2.1} parent=27 // pred_check
        %p348 = pneg %p104
      $region30: #{dice_loss2.1} parent=27 // pred_check_branch
        %350 = sbr.rel (%p348) target = $region32
      $region31: #{dice_loss2.1} parent=27 // pred_region
        _
      $region32: #{dice_loss2.1} parent=27 // pred_fallthru
        _
      // Predicated region
      $region33: #{dice_loss2.1} parent=27 // pred_check
        %p351 = pneg %p132
      $region34: #{dice_loss2.1} parent=27 // pred_check_branch
        %353 = sbr.rel (%p351) target = $region36
      $region35: #{dice_loss2.1} parent=27 // pred_region
        _
      $region36: #{dice_loss2.1} parent=27 // pred_fallthru
        _
      // Predicated region
      $region37: #{dice_loss2.1} parent=27 // pred_check
        %p354 = pneg %p160
      $region38: #{dice_loss2.1} parent=27 // pred_check_branch
        %356 = sbr.rel (%p354) target = $region40
      $region39: #{dice_loss2.1} parent=27 // pred_region
        _
      $region40: #{dice_loss2.1} parent=27 // pred_fallthru
        _
    $region28: #{dice_loss2.1} parent=5 // pred_fallthru
      _
    %p357 = scmp.le.s32.totalorder 2, %s11
    // Predicated region
    $region41: #{dice_loss2.1} parent=5 // pred_check
      %p358 = pneg %p357
    $region42: #{dice_loss2.1} parent=5 // pred_check_branch
      %360 = sbr.rel (%p358) target = $region44
    $region43: #{dice_loss2.1} parent=5 // pred_region
      %s361 = ssub.s32 %s11, 2
      // Predicated region
      $region45: #{dice_loss2.1} parent=43 // pred_check
        %p362 = pneg %p110
      $region46: #{dice_loss2.1} parent=43 // pred_check_branch
        %364 = sbr.rel (%p362) target = $region48
      $region47: #{dice_loss2.1} parent=43 // pred_region
        %p365 = scmp.lt.s32.totalorder %s22, 1
        %s366 = scalar_select %p365, %s22, 1
        %p367 = scmp.lt.s32.totalorder %s23, 0
        %s368 = scalar_select %p367, %s23, 0
        %s369 = sadd.s32 %s368, %s366
        %s370 = smul.addr %s369, 8
        %s371 = scalar_lea.vmem %s2, %s370
      $region48: #{dice_loss2.1} parent=43 // pred_fallthru
        _
      // Predicated region
      $region49: #{dice_loss2.1} parent=43 // pred_check
        %p372 = pneg %p138
      $region50: #{dice_loss2.1} parent=43 // pred_check_branch
        %374 = sbr.rel (%p372) target = $region52
      $region51: #{dice_loss2.1} parent=43 // pred_region
        %p375 = scmp.lt.s32.totalorder %s22, 1
        %s376 = scalar_select %p375, %s22, 1
        %p377 = scmp.lt.s32.totalorder %s23, 0
        %s378 = scalar_select %p377, %s23, 0
        %s379 = sadd.s32 %s378, %s376
        %s380 = smul.addr %s379, 8
        %s381 = scalar_lea.vmem %s3, %s380
      $region52: #{dice_loss2.1} parent=43 // pred_fallthru
        _
      // Predicated region
      $region53: #{dice_loss2.1} parent=43 // pred_check
        %p382 = pneg %p166
      $region54: #{dice_loss2.1} parent=43 // pred_check_branch
        %384 = sbr.rel (%p382) target = $region56
      $region55: #{dice_loss2.1} parent=43 // pred_region
        %p385 = scmp.lt.s32.totalorder %s22, 1
        %s386 = scalar_select %p385, %s22, 1
        %p387 = scmp.lt.s32.totalorder %s23, 0
        %s388 = scalar_select %p387, %s23, 0
        %s389 = sadd.s32 %s388, %s386
        %s390 = smul.addr %s389, 8
        %s391 = scalar_lea.vmem %s4, %s390
      $region56: #{dice_loss2.1} parent=43 // pred_fallthru
        _
    $region44: #{dice_loss2.1} parent=5 // pred_fallthru
      _
  $region6: #{dice_loss2.1} parent=0 // loop_footer
    %s15 = sadd.s32 1, %s11
  $region7: #{dice_loss2.1} parent=0 // loop_footer_branch
    %10 = sbr.rel target = $region3
  $region8: #{dice_loss2.1} parent=0 // loop_exit
    _

</llo_original>
